<compile_context>
chip_gen: v7x
topology: tpu7x:2x2x1
jax: 0.10.0
libtpu: 0.0.40
codegen_flags: <defaults>
</compile_context>

<pallas_src>
import jax
import jax.numpy as jnp
from jax.experimental import pallas as pl
from jax.experimental.pallas import tpu as pltpu


def _device_kind():
    try:
        return jax.devices()[0].device_kind.lower()
    except Exception:
        return ""


def _tile_budget_bytes():
    """Per-X-buffer VMEM budget (Pallas double-buffers it), by TPU generation."""
    kind = _device_kind()
    if "v7" in kind:
        return 12 << 20   # v7x: 3.2 TB/s HBM -> bigger tiles to amortize step overhead
    if "v5" in kind:
        return 4 << 20    # v5e: default scoped VMEM is only 16 MiB
    return 8 << 20        # v6e and anything unknown


def _is_v7x():
    return "v7" in _device_kind()


def _plan_tiles(B, L, D, itemsize, budget, want_two_parallel):
    """Pick (tb, td, tl, padded_L) satisfying the (8,128) constraint within budget."""
    # Batch tile: mask (tb, tl) and output (tb, td) need tb % 8 == 0 or tb == B.
    tb = 8 if B % 8 == 0 else B

    # L handling: tile (tl multiple of 128) when we can / must; otherwise full extent.
    if L % 128 == 0:
        pad_l, l_tileable = L, True
    elif tb * L * D * itemsize <= budget:
        pad_l, l_tileable = L, False                      # small: one full-L block
    else:
        pad_l, l_tileable = ((L + 127) // 128) * 128, True  # zero-pad L in wrapper
    tl_min = 128 if (l_tileable and pad_l > 128) else pad_l

    # D tile: full width if the minimal tile fits, else largest 128-multiple divisor.
    td = D
    if tb * tl_min * D * itemsize > budget and D % 128 == 0:
        td = 128
        while D % (td * 2) == 0 and tb * tl_min * (td * 2) * itemsize <= budget:
            td *= 2
    # TODO(synk): pad D when D % 128 != 0 and a full-D tile exceeds the budget.

    # v7x has 2 TensorCores: ensure at least one parallel axis has >= 2 blocks.
    if want_two_parallel and (B // tb) < 2 and (D // td) < 2 and td % 256 == 0:
        td //= 2

    # L tile: grow in powers of two while it divides padded L and fits the budget.
    tl = tl_min
    if l_tileable:
        while pad_l % (tl * 2) == 0 and tb * (tl * 2) * td * itemsize <= budget:
            tl *= 2

    return tb, td, tl, pad_l


def _make_kernel(has_mask, use_scratch, inv_l):
    def kernel(*refs):
        i = 0
        x_ref = refs[i]; i += 1
        m_ref = None
        if has_mask:
            m_ref = refs[i]; i += 1
        o_ref = refs[i]; i += 1
        acc_ref = refs[i] if use_scratch else o_ref   # f32 output: accumulate in place

        li = pl.program_id(2)

        @pl.when(li == 0)
        def _init():
            acc_ref[...] = jnp.zeros_like(acc_ref)

        x = x_ref[...]
        if has_mask:
            # mask is already X.dtype; 0/1 multiply is exact in bf16/f32
            x = x * m_ref[...][:, :, None]
        # reduce over L straight into an f32 accumulator (no full f32 tile copy)
        acc_ref[...] += jnp.sum(x, axis=1, dtype=jnp.float32)

        @pl.when(li == pl.num_programs(2) - 1)
        def _finalize():
            if use_scratch:
                o_ref[...] = (acc_ref[...] * inv_l).astype(o_ref.dtype)
            else:
                o_ref[...] = acc_ref[...] * inv_l

    return kernel


def masked_mean(X, m=None, *, tile_budget_bytes=None):
    """Pallas implementation of MaskedMean.forward(X, m).

    X: (B, L, D).  m: (B, L) / (B, L, 1) array, or None.  Returns (B, D) in X.dtype.
    """
    B, L, D = X.shape
    itemsize = jnp.dtype(X.dtype).itemsize
    budget = tile_budget_bytes if tile_budget_bytes is not None else _tile_budget_bytes()
    tb, td, tl, pad_l = _plan_tiles(B, L, D, itemsize, budget, _is_v7x())

    has_mask = m is not None
    Xp = X
    mp = None
    if has_mask:
        # cast once here (not per tile) and keep the mask 2-D (no padded lane dim)
        mp = jnp.asarray(m).reshape(B, L).astype(X.dtype)
    if pad_l != L:
        # zero-padding does not change the sum; the divisor stays the original L
        Xp = jnp.pad(Xp, ((0, 0), (0, pad_l - L), (0, 0)))
        if has_mask:
            mp = jnp.pad(mp, ((0, 0), (0, pad_l - L)))

    grid = (B // tb, D // td, pad_l // tl)
    inv_l = 1.0 / L
    use_scratch = jnp.dtype(X.dtype) != jnp.dtype(jnp.float32)

    in_specs = [pl.BlockSpec((tb, tl, td), lambda b, d, l: (b, l, d))]
    args = [Xp]
    if has_mask:
        in_specs.append(pl.BlockSpec((tb, tl), lambda b, d, l: (b, l)))
        args.append(mp)
    out_spec = pl.BlockSpec((tb, td), lambda b, d, l: (b, d))
    out_shape = jax.ShapeDtypeStruct((B, D), X.dtype)
    scratch = [pltpu.VMEM((tb, td), jnp.float32)] if use_scratch else []

    # VMEM actually needed: double-buffered X + mask + output, plus the accumulator.
    x_bytes = tb * tl * td * itemsize
    m_bytes = tb * tl * itemsize if has_mask else 0
    o_bytes = tb * td * itemsize
    acc_bytes = tb * td * 4 if use_scratch else 0
    needed = 2 * (x_bytes + m_bytes + o_bytes) + acc_bytes
    vmem_limit = int(min(max(needed * 3 // 2 + (2 << 20), 32 << 20), 64 << 20))

    return pl.pallas_call(
        _make_kernel(has_mask, use_scratch, inv_l),
        out_shape=out_shape,
        grid=grid,
        in_specs=in_specs,
        out_specs=out_spec,
        scratch_shapes=scratch,
        compiler_params=pltpu.CompilerParams(
            dimension_semantics=("parallel", "parallel", "arbitrary"),
            vmem_limit_bytes=vmem_limit),
    )(*args)


if __name__ == "__main__":
    key = jax.random.PRNGKey(0)
    kx, km, kx2, km2, kx3, km3, kx4, km4 = jax.random.split(key, 8)

    # Small shape consistent with the module (batch=2, seq=8, hidden=32).
    B, L, D = 2, 8, 32
    X = jax.random.normal(kx, (B, L, D), dtype=jnp.float32)
    m = (jax.random.uniform(km, (B, L)) > 0.3).astype(jnp.float32)

    out = jax.block_until_ready(masked_mean(X, m))
    ref = jnp.mean(X * m[:, :, None], axis=1)
    assert out.shape == (B, D)
    assert jnp.allclose(out, ref, atol=1e-5, rtol=1e-5)

    # "m is not a tensor" branch -> mask-free fast path.
    out_nm = jax.block_until_ready(masked_mean(X, None))
    assert jnp.allclose(out_nm, jnp.mean(X, axis=1), atol=1e-5, rtol=1e-5)

    # Larger f32 shape: exercises the L-tiled / output-resident accumulator path.
    B2, L2, D2 = 8, 512, 256
    X2 = jax.random.normal(kx2, (B2, L2, D2), dtype=jnp.float32)
    m2 = (jax.random.uniform(km2, (B2, L2)) > 0.5).astype(jnp.float32)
    out2 = jax.block_until_ready(masked_mean(X2, m2))
    ref2 = jnp.mean(X2 * m2[:, :, None], axis=1)
    assert jnp.allclose(out2, ref2, atol=1e-4, rtol=1e-4)

    # bf16 input: exercises the f32 scratch-accumulator path.
    B3, L3, D3 = 8, 256, 256
    X3 = jax.random.normal(kx3, (B3, L3, D3), dtype=jnp.float32).astype(jnp.bfloat16)
    m3 = (jax.random.uniform(km3, (B3, L3)) > 0.5).astype(jnp.bfloat16)
    out3 = jax.block_until_ready(masked_mean(X3, m3))
    ref3 = jnp.mean(X3.astype(jnp.float32) * m3.astype(jnp.float32)[:, :, None], axis=1)
    assert jnp.allclose(out3.astype(jnp.float32), ref3, atol=2e-2, rtol=2e-2)

    # Odd B, L not divisible by 128, tiny budget: exercises L zero-padding + D tiling.
    B4, L4, D4 = 4, 200, 256
    X4 = jax.random.normal(kx4, (B4, L4, D4), dtype=jnp.float32)
    m4 = (jax.random.uniform(km4, (B4, L4)) > 0.4).astype(jnp.float32)
    out4 = jax.block_until_ready(masked_mean(X4, m4, tile_budget_bytes=64 * 1024))
    ref4 = jnp.mean(X4 * m4[:, :, None], axis=1)
    assert jnp.allclose(out4, ref4, atol=1e-4, rtol=1e-4)

    print("KERNEL_OK")
</pallas_src>

<mosaic_0001>
module attributes {stable_mosaic.version = 11 : i64} {
  func.func @kernel(%arg0: i32, %arg1: i32, %arg2: i32, %arg3: memref<2x8x32xf32, #tpu.memory_space<vmem>>, %arg4: memref<2x8xf32, #tpu.memory_space<vmem>>, %arg5: memref<2x32xf32, #tpu.memory_space<vmem>>) attributes {dimension_semantics = [#tpu.dimension_semantics<parallel>, #tpu.dimension_semantics<parallel>, #tpu.dimension_semantics<arbitrary>], iteration_bounds = array<i64: 1, 1, 1>, scalar_prefetch = 0 : i64, scratch_operands = 0 : i64, tpu.core_type = #tpu.core_type<tc>, window_params = [{transform_indices = @transform_0, window_bounds = array<i64: 2, 8, 32>}, {transform_indices = @transform_1, window_bounds = array<i64: 2, 8>}, {transform_indices = @transform_2, window_bounds = array<i64: 2, 32>}]} {
    %c0_i32 = arith.constant 0 : i32
    %0 = arith.cmpi eq, %arg2, %c0_i32 : i32
    %1 = arith.extui %0 : i1 to i32
    %c0_i32_0 = arith.constant 0 : i32
    %2 = arith.cmpi ne, %1, %c0_i32_0 : i32
    scf.if %2 {
      %cst_11 = arith.constant 0.000000e+00 : f32
      %15 = vector.broadcast %cst_11 : f32 to vector<2x32xf32>
      %c0_12 = arith.constant 0 : index
      %c0_13 = arith.constant 0 : index
      %16 = vector.load %arg5[%c0_12, %c0_13] : memref<2x32xf32, #tpu.memory_space<vmem>>, vector<2x32xf32>
      tpu.vector_store %arg5[%c0_12, %c0_13], %15 {strides = array<i32>} : memref<2x32xf32, #tpu.memory_space<vmem>>, vector<2x32xf32>,
    } else {
    }
    %c0 = arith.constant 0 : index
    %c0_1 = arith.constant 0 : index
    %c0_2 = arith.constant 0 : index
    %3 = vector.load %arg3[%c0, %c0_1, %c0_2] : memref<2x8x32xf32, #tpu.memory_space<vmem>>, vector<2x8x32xf32>
    %c0_3 = arith.constant 0 : index
    %c0_4 = arith.constant 0 : index
    %4 = vector.load %arg4[%c0_3, %c0_4] : memref<2x8xf32, #tpu.memory_space<vmem>>, vector<2x8xf32>
    %5 = vector.shape_cast %4 : vector<2x8xf32> to vector<2x8x1xf32>
    %6 = vector.broadcast %5 : vector<2x8x1xf32> to vector<2x8x32xf32>
    %7 = arith.mulf %3, %6 : vector<2x8x32xf32>
    %c0_5 = arith.constant 0 : index
    %c0_6 = arith.constant 0 : index
    %8 = vector.load %arg5[%c0_5, %c0_6] : memref<2x32xf32, #tpu.memory_space<vmem>>, vector<2x32xf32>
    %cst = arith.constant dense<0.000000e+00> : vector<2x32xf32>
    %9 = vector.multi_reduction <add>, %7, %cst [1] : vector<2x8x32xf32> to vector<2x32xf32>
    %10 = arith.addf %8, %9 : vector<2x32xf32>
    %c0_7 = arith.constant 0 : index
    %c0_8 = arith.constant 0 : index
    %11 = vector.load %arg5[%c0_7, %c0_8] : memref<2x32xf32, #tpu.memory_space<vmem>>, vector<2x32xf32>
    tpu.vector_store %arg5[%c0_7, %c0_8], %10 {strides = array<i32>} : memref<2x32xf32, #tpu.memory_space<vmem>>, vector<2x32xf32>,
    %c0_i32_9 = arith.constant 0 : i32
    %12 = arith.cmpi eq, %arg2, %c0_i32_9 : i32
    %13 = arith.extui %12 : i1 to i32
    %c0_i32_10 = arith.constant 0 : i32
    %14 = arith.cmpi ne, %13, %c0_i32_10 : i32
    scf.if %14 {
      %c0_11 = arith.constant 0 : index
      %c0_12 = arith.constant 0 : index
      %15 = vector.load %arg5[%c0_11, %c0_12] : memref<2x32xf32, #tpu.memory_space<vmem>>, vector<2x32xf32>
      %cst_13 = arith.constant 1.250000e-01 : f32
      %16 = vector.broadcast %cst_13 : f32 to vector<2x32xf32>
      %17 = arith.mulf %15, %16 : vector<2x32xf32>
      %c0_14 = arith.constant 0 : index
      %c0_15 = arith.constant 0 : index
      %18 = vector.load %arg5[%c0_14, %c0_15] : memref<2x32xf32, #tpu.memory_space<vmem>>, vector<2x32xf32>
      tpu.vector_store %arg5[%c0_14, %c0_15], %17 {strides = array<i32>} : memref<2x32xf32, #tpu.memory_space<vmem>>, vector<2x32xf32>,
    } else {
    }
    return
  }
  func.func @transform_0(%arg0: i32, %arg1: i32, %arg2: i32) -> (i32, i32, i32) {
    %c0_i32 = arith.constant 0 : i32
    return %arg0, %arg2, %arg1 : i32, i32, i32
  }
  func.func @transform_1(%arg0: i32, %arg1: i32, %arg2: i32) -> (i32, i32) {
    %c0_i32 = arith.constant 0 : i32
    return %arg0, %arg2 : i32, i32
  }
  func.func @transform_2(%arg0: i32, %arg1: i32, %arg2: i32) -> (i32, i32) {
    %c0_i32 = arith.constant 0 : i32
    return %arg0, %arg1 : i32, i32
  }
}

</mosaic_0001>

<llo_original>
// kernel: tpu_custom_call.1
$region0: #{tpu_custom_call.1}
  #allocation0 [shape = 'u32[]', space=smem, size = 0x4, offset = 0x4, fixed_abs, tag = 'smem constant byte address 0x4 - core index']
  #allocation1 [shape = 'u32[144,128]{1,0:T(1,128)}', space=vmem, size = 0x12000, scoped, tag = 'internal scratch']
  %s0 = inlined_call_operand.hbm [shape: f32[2,8,32], index: 0, kind: input, shape index: {}]
  %s1 = inlined_call_operand.vmem [shape: f32[2,8], index: 1, kind: input, shape index: {}]
  %s2 = inlined_call_operand.hbm [shape: f32[2,32], index: 2, kind: output, shape index: {}]
  %s3 = sld [smem:[#allocation0]]
  $region30: #{tpu_custom_call.1} parent=0
    _
  %s5 = ssub.s32 1, %s3
  %s6 = scalar_select 0, %s5, %s3
  $region1: #{tpu_custom_call.1} parent=0
    #allocation2 [shape = 'u8[8192]{0}', space=vmem, size = 0x2000, scoped, tag = 'input window, operand 0, single buffered']
    #allocation3 [shape = 's32[1]{0}', space=sflag, size = 0x4, scoped, tag = 'scoped memory for tpu_custom_call.1']
    #allocation4 [shape = 's32[1]{0}', space=sflag, size = 0x4, scoped, tag = 'scoped memory for tpu_custom_call.1']
    #allocation5 [shape = 'u8[1024]{0}', space=vmem, size = 0x400, scoped, tag = 'output window, operand 0, single buffered']
    %7 = vsyncpa [#allocation3], 0
    %8 = vsyncpa [#allocation4], 0
    // Predicated region
    $region2: #{tpu_custom_call.1} parent=1 // pred_check
      _
    $region3: #{tpu_custom_call.1} parent=1 // pred_check_branch
      %10 = sbr.rel (0) target = $region5
    $region4: #{tpu_custom_call.1} parent=1 // pred_region
      %s12 = ssub.s32 256, 256
      %13 = vsyncadd [#allocation3], %s12
      %s14 = sshll.u32 [#allocation2], 4
      %s15 = int_to_ptr.vmem [resolvable:$true] %s14
      %20 = dma.hbm_to_vmem [thread:$0]  %s0, 256, %s15, [#allocation3], 128, 128, 8
    $region5: #{tpu_custom_call.1} parent=1 // pred_fallthru
      _
    // Predicated region
    $region6: #{tpu_custom_call.1} parent=1 // pred_check
      _
    $region7: #{tpu_custom_call.1} parent=1 // pred_check_branch
      %22 = sbr.rel (0) target = $region9
    $region8: #{tpu_custom_call.1} parent=1 // pred_region
      _
    $region9: #{tpu_custom_call.1} parent=1 // pred_fallthru
      _
    // Predicated region
    $region10: #{tpu_custom_call.1} parent=1 // pred_check
      _
    $region11: #{tpu_custom_call.1} parent=1 // pred_check_branch
      %24 = sbr.rel (0) target = $region13
    $region12: #{tpu_custom_call.1} parent=1 // pred_region
      %25 = dma.done [#allocation3], 256
    $region13: #{tpu_custom_call.1} parent=1 // pred_fallthru
      _
    %p26 = scmp.eq.s32.totalorder 0, 0
    // Predicated region
    $region14: #{tpu_custom_call.1} parent=1 // pred_check
      %p27 = pneg %p26
    $region15: #{tpu_custom_call.1} parent=1 // pred_check_branch
      %29 = sbr.rel (%p27) target = $region17
    $region16: #{tpu_custom_call.1} parent=1 // pred_region
      %vm30 = vcmask 254976
      %31 = vst.msk [vmem:[#allocation5] sm:$0x3] %vm30, 0.0
    $region17: #{tpu_custom_call.1} parent=1 // pred_fallthru
      _
    %v32 = vld [vmem:[#allocation2] sm:$0xff]
    %v33 = vld [vmem:[#allocation2 + $0x8] sm:$0xff]
    %v34 = vld [vmem:[%s1] sm:$0x3]
    %v35 = vlaneseq
    %v36 = vshrl.u32 %v35, 7
    %v37 = vsub.s32 0, %v36
    %v38 = vrot.slane %v34, %v37
    %40 = vbcast.lane.b32.xlu0 %v38, 256
    %v41 = vpop.permute.xlu0 %40
    %v42 = vlaneseq
    %v43 = vshrl.u32 %v42, 7
    %v44 = vsub.s32 1, %v43
    %v45 = vrot.slane %v34, %v44
    %47 = vbcast.lane.b32.xlu0 %v45, 256
    %v48 = vpop.permute.xlu0 %47
    %v49 = vmul.f32 %v32, %v41
    %v50 = vmul.f32 %v33, %v48
    %v51 = vld [vmem:[#allocation5] sm:$0x3]
    %vm52 = vcmask 261120
    %v53 = vsel %vm52, %v49, 0.0
    %v54 = vrot.slane %v53, 4
    %v55 = vadd.f32 %v53, %v54
    %v56 = vrot.slane %v55, 2
    %v57 = vadd.f32 %v55, %v56
    %v58 = vrot.slane %v57, 1
    %v59 = vadd.f32 %v57, %v58
    %v60 = vsel %vm52, %v50, 0.0
    %v61 = vrot.slane %v60, 4
    %v62 = vadd.f32 %v60, %v61
    %v63 = vrot.slane %v62, 2
    %v64 = vadd.f32 %v62, %v63
    %v65 = vrot.slane %v64, 1
    %v66 = vadd.f32 %v64, %v65
    %vm69 = vcmask 1041409
    %v70 = vsel %vm69, %v66, %v59
    %v72 = vadd.f32 %v51, %v70
    %vm73 = vcmask 254976
    %74 = vst.msk [vmem:[#allocation5] sm:$0x3] %vm73, %v72
    // Predicated region
    $region18: #{tpu_custom_call.1} parent=1 // pred_check
      %p75 = pneg %p26
    $region19: #{tpu_custom_call.1} parent=1 // pred_check_branch
      %77 = sbr.rel (%p75) target = $region21
    $region20: #{tpu_custom_call.1} parent=1 // pred_region
      %v78 = vld [vmem:[#allocation5] sm:$0x3]
      %v79 = vmul.f32 %v78, 0.125
      %80 = vst.msk [vmem:[#allocation5] sm:$0x3] %vm73, %v79
    $region21: #{tpu_custom_call.1} parent=1 // pred_fallthru
      _
    // Predicated region
    $region22: #{tpu_custom_call.1} parent=1 // pred_check
      _
    $region23: #{tpu_custom_call.1} parent=1 // pred_check_branch
      %82 = sbr.rel (0) target = $region25
    $region24: #{tpu_custom_call.1} parent=1 // pred_region
      %s84 = ssub.s32 32, 32
      %85 = vsyncadd [#allocation4], %s84
      %s87 = sshll.u32 [#allocation5], 4
      %s88 = int_to_ptr.vmem [resolvable:$true] %s87
      %90 = dma.vmem_to_hbm [thread:$0]  %s88, 32, %s2, [#allocation4]
    $region25: #{tpu_custom_call.1} parent=1 // pred_fallthru
      _
    // Predicated region
    $region26: #{tpu_custom_call.1} parent=1 // pred_check
      _
    $region27: #{tpu_custom_call.1} parent=1 // pred_check_branch
      %92 = sbr.rel (0) target = $region29
    $region28: #{tpu_custom_call.1} parent=1 // pred_region
      %93 = dma.done [#allocation4], 32
    $region29: #{tpu_custom_call.1} parent=1 // pred_fallthru
      _
    %94 = vsyncpa [#allocation3], 1
    %95 = vsyncpa [#allocation4], 1

</llo_original>
